<compile_context>
chip_gen: v5e
topology: v5e:2x2
jax: 0.10.0
libtpu: 0.0.40
codegen_flags: <defaults>
</compile_context>

<pallas_src>
import functools

import jax
import jax.numpy as jnp
from jax.experimental import pallas as pl
from jax.experimental.pallas import tpu as pltpu


def _relation_kernel(hi_ref, haT_ref, w2_ref, b2_ref, out_ref, acc_ref):
    # hi_ref : (Bt, HC)    image half of fc1 (b1 folded in), compute dtype
    # haT_ref: (HC, Ct)    attribute half of fc1, pre-transposed (H sublanes, C lanes)
    # w2_ref : (H_pad,)    fc2 weight row, SMEM scalar table
    # b2_ref : (1,)        fc2 bias, SMEM scalar
    # out_ref: (Bt, Ct)    f32, written only on the last H chunk
    # acc_ref: (Bt, Ct)    f32 VMEM scratch, resident across the k (H-chunk) axis
    k = pl.program_id(2)

    @pl.when(k == 0)
    def _():
        acc_ref[...] = jnp.zeros_like(acc_ref)

    hc = hi_ref.shape[1]            # static H-chunk size (<= 128)
    h_base = k * hc
    acc = acc_ref[...]

    # Vreg-resident (Bt, Ct) accumulation over H: per h we do
    #   acc += relu(hi_col + ha_row) * w2[h]
    # (lane-broadcast of the image column, sublane-broadcast of the attribute
    #  row, then add/max/scale/accumulate on the VPU).  No (Bt, Ct, H) slab,
    #  no cross-lane reduce, no output relayout.
    for hh in range(hc):            # static unroll, hc <= 128
        col = hi_ref[:, hh:hh + 1]          # (Bt, 1)
        row = haT_ref[hh:hh + 1, :]         # (1, Ct)
        x = jnp.maximum(col + row, 0.0)     # (Bt, Ct), relu in compute dtype
        acc = acc + x.astype(jnp.float32) * w2_ref[h_base + hh]

    acc_ref[...] = acc

    @pl.when(k == pl.num_programs(2) - 1)
    def _():
        out_ref[...] = jax.nn.sigmoid(acc + b2_ref[0])


def _round_up(x, m):
    return ((x + m - 1) // m) * m


@functools.partial(jax.jit, static_argnames=("use_bf16", "interpret"))
def relation_module_forward(image_feats, attributes, params,
                            use_bf16=False, interpret=False):
    """image_feats: (B, F), attributes: (C, F) -> (B, C) f32 (matches PyTorch).

    use_bf16=True does the pairwise add/relu in bf16 with f32 accumulation
    (worthwhile on v6e/v7x; keep False on v5e and for tight f32 tolerances).
    """
    B, F = image_feats.shape
    C, F2 = attributes.shape
    assert F == F2, "attributes must share feat_dim with image_feats"

    w1, b1, w2, b2 = params["w1"], params["b1"], params["w2"], params["b2"]
    H = w1.shape[0]
    assert w1.shape == (H, 2 * F) and w2.shape == (1, H)

    f32 = jnp.float32
    img = image_feats.astype(f32)
    attr = attributes.astype(f32)

    # fc1 halves hoisted out of the Pallas grid (tiny matmuls, done once by XLA).
    w1a = w1[:, :F].astype(f32)
    w1b = w1[:, F:].astype(f32)
    h_img = img @ w1a.T + b1.astype(f32)[None, :]     # (B, H), b1 folded in
    h_attrT = w1b @ attr.T                            # (H, C), already transposed
    w2_flat = w2.astype(f32).reshape(H)               # (H,)  -> SMEM table
    b2_flat = b2.astype(f32).reshape(1)               # (1,)  -> SMEM scalar

    # ---- tiling ----------------------------------------------------------
    # H chunking: <=128 H values per grid step (full static unroll in-kernel).
    H_pad = _round_up(H, 8)
    if H_pad > 128:
        HC = 128
        H_pad = _round_up(H, 128)
    else:
        HC = H_pad

    # Adaptive class tile: 256 only when it causes no extra padding (lane-dense
    # either way); Bt capped so the (Bt, Ct) f32 accumulator is <= 16 vregs.
    C128 = _round_up(C, 128)
    Ct = 256 if (C128 % 256 == 0) else 128
    C_pad = _round_up(C, Ct)
    Bt = min(16384 // Ct, _round_up(B, 8))
    B_pad = _round_up(B, Bt)

    # v7x megacore: make sure there are >=2 steps along a "parallel" axis when
    # the problem is big enough to split (no effect on v5e/v6e).
    if (B_pad // Bt) * (C_pad // Ct) == 1:
        if Bt >= 16:
            Bt = max(8, (Bt // 2) // 8 * 8)
            B_pad = _round_up(B, Bt)
        elif Ct >= 256:
            Ct = 128
            C_pad = _round_up(C, Ct)

    compute_dtype = jnp.bfloat16 if use_bf16 else f32

    def pad2(x, rows, cols):
        return jnp.pad(x, ((0, rows - x.shape[0]), (0, cols - x.shape[1])))

    # Zero padding is exact: padded h rows give relu(0+0)*0 = 0, padded
    # batch/class rows are sliced off at the end.
    hi_p = pad2(h_img, B_pad, H_pad).astype(compute_dtype)
    haT_p = pad2(h_attrT, H_pad, C_pad).astype(compute_dtype)
    w2_p = jnp.pad(w2_flat, (0, H_pad - H))

    grid = (B_pad // Bt, C_pad // Ct, H_pad // HC)

    cost = pl.CostEstimate(
        flops=4 * B_pad * C_pad * H_pad,
        transcendentals=B_pad * C_pad,
        bytes_accessed=4 * (B_pad * H_pad + H_pad * C_pad + B_pad * C_pad
                            + H_pad + 1),
    )

    out = pl.pallas_call(
        _relation_kernel,
        out_shape=jax.ShapeDtypeStruct((B_pad, C_pad), f32),
        grid=grid,
        in_specs=[
            pl.BlockSpec((Bt, HC), lambda i, j, k: (i, k)),       # image tile
            pl.BlockSpec((HC, Ct), lambda i, j, k: (k, j)),       # attr tile (H, C)
            pl.BlockSpec(memory_space=pltpu.MemorySpace.SMEM),    # w2 table
            pl.BlockSpec(memory_space=pltpu.MemorySpace.SMEM),    # b2 scalar
        ],
        out_specs=pl.BlockSpec((Bt, Ct), lambda i, j, k: (i, j)),
        scratch_shapes=[pltpu.VMEM((Bt, Ct), f32)],               # accumulator
        compiler_params=pltpu.CompilerParams(
            dimension_semantics=("parallel", "parallel", "arbitrary"),
        ),
        cost_estimate=cost,
        interpret=interpret,
    )(hi_p, haT_p, w2_p, b2_flat)

    return out[:B, :C]


def init_params(key, in_C, hidden_C):
    """Deterministic init mimicking nn.Linear default (uniform +-1/sqrt(fan_in))."""
    k1, k2, k3, k4 = jax.random.split(key, 4)
    bound1 = 1.0 / jnp.sqrt(in_C)
    bound2 = 1.0 / jnp.sqrt(hidden_C)
    return {
        "w1": jax.random.uniform(k1, (hidden_C, in_C), jnp.float32, -bound1, bound1),
        "b1": jax.random.uniform(k2, (hidden_C,), jnp.float32, -bound1, bound1),
        "w2": jax.random.uniform(k3, (1, hidden_C), jnp.float32, -bound2, bound2),
        "b2": jax.random.uniform(k4, (1,), jnp.float32, -bound2, bound2),
    }


def reference_forward(image_feats, attributes, params):
    """Pure-JAX reference mirroring the PyTorch forward exactly."""
    B, F = image_feats.shape
    C, _ = attributes.shape
    img_ext = jnp.broadcast_to(image_feats[:, None, :], (B, C, F))
    att_ext = jnp.broadcast_to(attributes[None, :, :], (B, C, F))
    pairs = jnp.concatenate([img_ext, att_ext], axis=2)            # (B, C, 2F)
    x = jax.nn.relu(pairs @ params["w1"].T + params["b1"])
    out = jax.nn.sigmoid(x @ params["w2"].T + params["b2"])
    return out.reshape(B, C)


if __name__ == "__main__":
    key = jax.random.PRNGKey(0)

    # --- small smoke test (single grid step, H fits one chunk) -------------
    k_img, k_attr, k_param = jax.random.split(jax.random.fold_in(key, 0), 3)
    batch, cls_num, feat_dim, hidden = 8, 16, 32, 32
    image_feats = jax.random.normal(k_img, (batch, feat_dim), jnp.float32)
    attributes = jax.random.normal(k_attr, (cls_num, feat_dim), jnp.float32)
    params = init_params(k_param, in_C=2 * feat_dim, hidden_C=hidden)

    out = relation_module_forward(image_feats, attributes, params)
    out = jax.block_until_ready(out)
    ref = reference_forward(image_feats, attributes, params)
    assert out.shape == (batch, cls_num)
    assert jnp.allclose(out, ref, atol=1e-5, rtol=1e-5), "mismatch vs reference (small)"

    # --- larger test: multi-chunk H accumulation, padded H/C, split batch tile
    k_img, k_attr, k_param = jax.random.split(jax.random.fold_in(key, 1), 3)
    batch2, cls_num2, feat_dim2, hidden2 = 16, 200, 64, 200
    image_feats2 = jax.random.normal(k_img, (batch2, feat_dim2), jnp.float32)
    attributes2 = jax.random.normal(k_attr, (cls_num2, feat_dim2), jnp.float32)
    params2 = init_params(k_param, in_C=2 * feat_dim2, hidden_C=hidden2)

    out2 = relation_module_forward(image_feats2, attributes2, params2)
    out2 = jax.block_until_ready(out2)
    ref2 = reference_forward(image_feats2, attributes2, params2)
    assert out2.shape == (batch2, cls_num2)
    assert jnp.allclose(out2, ref2, atol=1e-4, rtol=1e-4), "mismatch vs reference (large)"

    # TODO(synk): flip use_bf16=True on v6e/v7x deployments (loosen tolerance to ~1e-2).
    print("KERNEL_OK")
</pallas_src>

<mosaic_0001>
module attributes {stable_mosaic.version = 11 : i64} {
  func.func @_relation_kernel(%arg0: i32, %arg1: i32, %arg2: i32, %arg3: memref<8x32xf32, #tpu.memory_space<vmem>>, %arg4: memref<32x128xf32, #tpu.memory_space<vmem>>, %arg5: memref<32xf32, #tpu.memory_space<smem>>, %arg6: memref<1xf32, #tpu.memory_space<smem>>, %arg7: memref<8x128xf32, #tpu.memory_space<vmem>>, %arg8: memref<8x128xf32, #tpu.memory_space<vmem>>) attributes {dimension_semantics = [#tpu.dimension_semantics<parallel>, #tpu.dimension_semantics<parallel>, #tpu.dimension_semantics<arbitrary>], iteration_bounds = array<i64: 1, 1, 1>, scalar_prefetch = 0 : i64, scratch_operands = 1 : i64, tpu.core_type = #tpu.core_type<tc>, window_params = [{transform_indices = @transform_0, window_bounds = array<i64: 8, 32>}, {transform_indices = @transform_1, window_bounds = array<i64: 32, 128>}, {transform_indices = @transform_2, window_bounds = array<i64: 32>}, {transform_indices = @transform_3, window_bounds = array<i64: 1>}, {transform_indices = @transform_4, window_bounds = array<i64: 8, 128>}]} {
    %c0_i32 = arith.constant 0 : i32
    %0 = arith.cmpi eq, %arg2, %c0_i32 : i32
    %1 = arith.extui %0 : i1 to i32
    %c0_i32_0 = arith.constant 0 : i32
    %2 = arith.cmpi ne, %1, %c0_i32_0 : i32
    scf.if %2 {
      %cst_135 = arith.constant 0.000000e+00 : f32
      %425 = vector.broadcast %cst_135 : f32 to vector<8x128xf32>
      %c0_136 = arith.constant 0 : index
      %c0_137 = arith.constant 0 : index
      %426 = vector.load %arg8[%c0_136, %c0_137] : memref<8x128xf32, #tpu.memory_space<vmem>>, vector<8x128xf32>
      tpu.vector_store %arg8[%c0_136, %c0_137], %425 {strides = array<i32>} : memref<8x128xf32, #tpu.memory_space<vmem>>, vector<8x128xf32>,
    } else {
    }
    %c32_i32 = arith.constant 32 : i32
    %3 = arith.muli %arg2, %c32_i32 : i32
    %c0 = arith.constant 0 : index
    %c0_1 = arith.constant 0 : index
    %4 = vector.load %arg8[%c0, %c0_1] : memref<8x128xf32, #tpu.memory_space<vmem>>, vector<8x128xf32>
    %c0_2 = arith.constant 0 : index
    %c0_3 = arith.constant 0 : index
    %5 = vector.load %arg3[%c0_2, %c0_3] : memref<8x32xf32, #tpu.memory_space<vmem>>, vector<8x1xf32>
    %c0_4 = arith.constant 0 : index
    %c0_5 = arith.constant 0 : index
    %6 = vector.load %arg4[%c0_4, %c0_5] : memref<32x128xf32, #tpu.memory_space<vmem>>, vector<1x128xf32>
    %7 = vector.broadcast %5 : vector<8x1xf32> to vector<8x128xf32>
    %8 = vector.broadcast %6 : vector<1x128xf32> to vector<8x128xf32>
    %9 = arith.addf %7, %8 : vector<8x128xf32>
    %cst = arith.constant 0.000000e+00 : f32
    %10 = vector.broadcast %cst : f32 to vector<8x128xf32>
    %11 = arith.maximumf %9, %10 : vector<8x128xf32>
    %c0_i32_6 = arith.constant 0 : i32
    %12 = arith.addi %3, %c0_i32_6 : i32
    %13 = arith.index_cast %12 : i32 to index
    %14 = memref.load %arg5[%13] : memref<32xf32, #tpu.memory_space<smem>>
    %15 = vector.broadcast %14 : f32 to vector<8x128xf32>
    %16 = arith.mulf %11, %15 : vector<8x128xf32>
    %17 = arith.addf %4, %16 : vector<8x128xf32>
    %c0_7 = arith.constant 0 : index
    %c1 = arith.constant 1 : index
    %18 = vector.load %arg3[%c0_7, %c1] : memref<8x32xf32, #tpu.memory_space<vmem>>, vector<8x1xf32>
    %c1_8 = arith.constant 1 : index
    %c0_9 = arith.constant 0 : index
    %19 = vector.load %arg4[%c1_8, %c0_9] : memref<32x128xf32, #tpu.memory_space<vmem>>, vector<1x128xf32>
    %20 = vector.broadcast %18 : vector<8x1xf32> to vector<8x128xf32>
    %21 = vector.broadcast %19 : vector<1x128xf32> to vector<8x128xf32>
    %22 = arith.addf %20, %21 : vector<8x128xf32>
    %cst_10 = arith.constant 0.000000e+00 : f32
    %23 = vector.broadcast %cst_10 : f32 to vector<8x128xf32>
    %24 = arith.maximumf %22, %23 : vector<8x128xf32>
    %c1_i32 = arith.constant 1 : i32
    %25 = arith.addi %3, %c1_i32 : i32
    %26 = arith.index_cast %25 : i32 to index
    %27 = memref.load %arg5[%26] : memref<32xf32, #tpu.memory_space<smem>>
    %28 = vector.broadcast %27 : f32 to vector<8x128xf32>
    %29 = arith.mulf %24, %28 : vector<8x128xf32>
    %30 = arith.addf %17, %29 : vector<8x128xf32>
    %c0_11 = arith.constant 0 : index
    %c2 = arith.constant 2 : index
    %31 = vector.load %arg3[%c0_11, %c2] : memref<8x32xf32, #tpu.memory_space<vmem>>, vector<8x1xf32>
    %c2_12 = arith.constant 2 : index
    %c0_13 = arith.constant 0 : index
    %32 = vector.load %arg4[%c2_12, %c0_13] : memref<32x128xf32, #tpu.memory_space<vmem>>, vector<1x128xf32>
    %33 = vector.broadcast %31 : vector<8x1xf32> to vector<8x128xf32>
    %34 = vector.broadcast %32 : vector<1x128xf32> to vector<8x128xf32>
    %35 = arith.addf %33, %34 : vector<8x128xf32>
    %cst_14 = arith.constant 0.000000e+00 : f32
    %36 = vector.broadcast %cst_14 : f32 to vector<8x128xf32>
    %37 = arith.maximumf %35, %36 : vector<8x128xf32>
    %c2_i32 = arith.constant 2 : i32
    %38 = arith.addi %3, %c2_i32 : i32
    %39 = arith.index_cast %38 : i32 to index
    %40 = memref.load %arg5[%39] : memref<32xf32, #tpu.memory_space<smem>>
    %41 = vector.broadcast %40 : f32 to vector<8x128xf32>
    %42 = arith.mulf %37, %41 : vector<8x128xf32>
    %43 = arith.addf %30, %42 : vector<8x128xf32>
    %c0_15 = arith.constant 0 : index
    %c3 = arith.constant 3 : index
    %44 = vector.load %arg3[%c0_15, %c3] : memref<8x32xf32, #tpu.memory_space<vmem>>, vector<8x1xf32>
    %c3_16 = arith.constant 3 : index
    %c0_17 = arith.constant 0 : index
    %45 = vector.load %arg4[%c3_16, %c0_17] : memref<32x128xf32, #tpu.memory_space<vmem>>, vector<1x128xf32>
    %46 = vector.broadcast %44 : vector<8x1xf32> to vector<8x128xf32>
    %47 = vector.broadcast %45 : vector<1x128xf32> to vector<8x128xf32>
    %48 = arith.addf %46, %47 : vector<8x128xf32>
    %cst_18 = arith.constant 0.000000e+00 : f32
    %49 = vector.broadcast %cst_18 : f32 to vector<8x128xf32>
    %50 = arith.maximumf %48, %49 : vector<8x128xf32>
    %c3_i32 = arith.constant 3 : i32
    %51 = arith.addi %3, %c3_i32 : i32
    %52 = arith.index_cast %51 : i32 to index
    %53 = memref.load %arg5[%52] : memref<32xf32, #tpu.memory_space<smem>>
    %54 = vector.broadcast %53 : f32 to vector<8x128xf32>
    %55 = arith.mulf %50, %54 : vector<8x128xf32>
    %56 = arith.addf %43, %55 : vector<8x128xf32>
    %c0_19 = arith.constant 0 : index
    %c4 = arith.constant 4 : index
    %57 = vector.load %arg3[%c0_19, %c4] : memref<8x32xf32, #tpu.memory_space<vmem>>, vector<8x1xf32>
    %c4_20 = arith.constant 4 : index
    %c0_21 = arith.constant 0 : index
    %58 = vector.load %arg4[%c4_20, %c0_21] : memref<32x128xf32, #tpu.memory_space<vmem>>, vector<1x128xf32>
    %59 = vector.broadcast %57 : vector<8x1xf32> to vector<8x128xf32>
    %60 = vector.broadcast %58 : vector<1x128xf32> to vector<8x128xf32>
    %61 = arith.addf %59, %60 : vector<8x128xf32>
    %cst_22 = arith.constant 0.000000e+00 : f32
    %62 = vector.broadcast %cst_22 : f32 to vector<8x128xf32>
    %63 = arith.maximumf %61, %62 : vector<8x128xf32>
    %c4_i32 = arith.constant 4 : i32
    %64 = arith.addi %3, %c4_i32 : i32
    %65 = arith.index_cast %64 : i32 to index
    %66 = memref.load %arg5[%65] : memref<32xf32, #tpu.memory_space<smem>>
    %67 = vector.broadcast %66 : f32 to vector<8x128xf32>
    %68 = arith.mulf %63, %67 : vector<8x128xf32>
    %69 = arith.addf %56, %68 : vector<8x128xf32>
    %c0_23 = arith.constant 0 : index
    %c5 = arith.constant 5 : index
    %70 = vector.load %arg3[%c0_23, %c5] : memref<8x32xf32, #tpu.memory_space<vmem>>, vector<8x1xf32>
    %c5_24 = arith.constant 5 : index
    %c0_25 = arith.constant 0 : index
    %71 = vector.load %arg4[%c5_24, %c0_25] : memref<32x128xf32, #tpu.memory_space<vmem>>, vector<1x128xf32>
    %72 = vector.broadcast %70 : vector<8x1xf32> to vector<8x128xf32>
    %73 = vector.broadcast %71 : vector<1x128xf32> to vector<8x128xf32>
    %74 = arith.addf %72, %73 : vector<8x128xf32>
    %cst_26 = arith.constant 0.000000e+00 : f32
    %75 = vector.broadcast %cst_26 : f32 to vector<8x128xf32>
    %76 = arith.maximumf %74, %75 : vector<8x128xf32>
    %c5_i32 = arith.constant 5 : i32
    %77 = arith.addi %3, %c5_i32 : i32
    %78 = arith.index_cast %77 : i32 to index
    %79 = memref.load %arg5[%78] : memref<32xf32, #tpu.memory_space<smem>>
    %80 = vector.broadcast %79 : f32 to vector<8x128xf32>
    %81 = arith.mulf %76, %80 : vector<8x128xf32>
    %82 = arith.addf %69, %81 : vector<8x128xf32>
    %c0_27 = arith.constant 0 : index
    %c6 = arith.constant 6 : index
    %83 = vector.load %arg3[%c0_27, %c6] : memref<8x32xf32, #tpu.memory_space<vmem>>, vector<8x1xf32>
    %c6_28 = arith.constant 6 : index
    %c0_29 = arith.constant 0 : index
    %84 = vector.load %arg4[%c6_28, %c0_29] : memref<32x128xf32, #tpu.memory_space<vmem>>, vector<1x128xf32>
    %85 = vector.broadcast %83 : vector<8x1xf32> to vector<8x128xf32>
    %86 = vector.broadcast %84 : vector<1x128xf32> to vector<8x128xf32>
    %87 = arith.addf %85, %86 : vector<8x128xf32>
    %cst_30 = arith.constant 0.000000e+00 : f32
    %88 = vector.broadcast %cst_30 : f32 to vector<8x128xf32>
    %89 = arith.maximumf %87, %88 : vector<8x128xf32>
    %c6_i32 = arith.constant 6 : i32
    %90 = arith.addi %3, %c6_i32 : i32
    %91 = arith.index_cast %90 : i32 to index
    %92 = memref.load %arg5[%91] : memref<32xf32, #tpu.memory_space<smem>>
    %93 = vector.broadcast %92 : f32 to vector<8x128xf32>
    %94 = arith.mulf %89, %93 : vector<8x128xf32>
    %95 = arith.addf %82, %94 : vector<8x128xf32>
    %c0_31 = arith.constant 0 : index
    %c7 = arith.constant 7 : index
    %96 = vector.load %arg3[%c0_31, %c7] : memref<8x32xf32, #tpu.memory_space<vmem>>, vector<8x1xf32>
    %c7_32 = arith.constant 7 : index
    %c0_33 = arith.constant 0 : index
    %97 = vector.load %arg4[%c7_32, %c0_33] : memref<32x128xf32, #tpu.memory_space<vmem>>, vector<1x128xf32>
    %98 = vector.broadcast %96 : vector<8x1xf32> to vector<8x128xf32>
    %99 = vector.broadcast %97 : vector<1x128xf32> to vector<8x128xf32>
    %100 = arith.addf %98, %99 : vector<8x128xf32>
    %cst_34 = arith.constant 0.000000e+00 : f32
    %101 = vector.broadcast %cst_34 : f32 to vector<8x128xf32>
    %102 = arith.maximumf %100, %101 : vector<8x128xf32>
    %c7_i32 = arith.constant 7 : i32
    %103 = arith.addi %3, %c7_i32 : i32
    %104 = arith.index_cast %103 : i32 to index
    %105 = memref.load %arg5[%104] : memref<32xf32, #tpu.memory_space<smem>>
    %106 = vector.broadcast %105 : f32 to vector<8x128xf32>
    %107 = arith.mulf %102, %106 : vector<8x128xf32>
    %108 = arith.addf %95, %107 : vector<8x128xf32>
    %c0_35 = arith.constant 0 : index
    %c8 = arith.constant 8 : index
    %109 = vector.load %arg3[%c0_35, %c8] : memref<8x32xf32, #tpu.memory_space<vmem>>, vector<8x1xf32>
    %c8_36 = arith.constant 8 : index
    %c0_37 = arith.constant 0 : index
    %110 = vector.load %arg4[%c8_36, %c0_37] : memref<32x128xf32, #tpu.memory_space<vmem>>, vector<1x128xf32>
    %111 = vector.broadcast %109 : vector<8x1xf32> to vector<8x128xf32>
    %112 = vector.broadcast %110 : vector<1x128xf32> to vector<8x128xf32>
    %113 = arith.addf %111, %112 : vector<8x128xf32>
    %cst_38 = arith.constant 0.000000e+00 : f32
    %114 = vector.broadcast %cst_38 : f32 to vector<8x128xf32>
    %115 = arith.maximumf %113, %114 : vector<8x128xf32>
    %c8_i32 = arith.constant 8 : i32
    %116 = arith.addi %3, %c8_i32 : i32
    %117 = arith.index_cast %116 : i32 to index
    %118 = memref.load %arg5[%117] : memref<32xf32, #tpu.memory_space<smem>>
    %119 = vector.broadcast %118 : f32 to vector<8x128xf32>
    %120 = arith.mulf %115, %119 : vector<8x128xf32>
    %121 = arith.addf %108, %120 : vector<8x128xf32>
    %c0_39 = arith.constant 0 : index
    %c9 = arith.constant 9 : index
    %122 = vector.load %arg3[%c0_39, %c9] : memref<8x32xf32, #tpu.memory_space<vmem>>, vector<8x1xf32>
    %c9_40 = arith.constant 9 : index
    %c0_41 = arith.constant 0 : index
    %123 = vector.load %arg4[%c9_40, %c0_41] : memref<32x128xf32, #tpu.memory_space<vmem>>, vector<1x128xf32>
    %124 = vector.broadcast %122 : vector<8x1xf32> to vector<8x128xf32>
    %125 = vector.broadcast %123 : vector<1x128xf32> to vector<8x128xf32>
    %126 = arith.addf %124, %125 : vector<8x128xf32>
    %cst_42 = arith.constant 0.000000e+00 : f32
    %127 = vector.broadcast %cst_42 : f32 to vector<8x128xf32>
    %128 = arith.maximumf %126, %127 : vector<8x128xf32>
    %c9_i32 = arith.constant 9 : i32
    %129 = arith.addi %3, %c9_i32 : i32
    %130 = arith.index_cast %129 : i32 to index
    %131 = memref.load %arg5[%130] : memref<32xf32, #tpu.memory_space<smem>>
    %132 = vector.broadcast %131 : f32 to vector<8x128xf32>
    %133 = arith.mulf %128, %132 : vector<8x128xf32>
    %134 = arith.addf %121, %133 : vector<8x128xf32>
    %c0_43 = arith.constant 0 : index
    %c10 = arith.constant 10 : index
    %135 = vector.load %arg3[%c0_43, %c10] : memref<8x32xf32, #tpu.memory_space<vmem>>, vector<8x1xf32>
    %c10_44 = arith.constant 10 : index
    %c0_45 = arith.constant 0 : index
    %136 = vector.load %arg4[%c10_44, %c0_45] : memref<32x128xf32, #tpu.memory_space<vmem>>, vector<1x128xf32>
    %137 = vector.broadcast %135 : vector<8x1xf32> to vector<8x128xf32>
    %138 = vector.broadcast %136 : vector<1x128xf32> to vector<8x128xf32>
    %139 = arith.addf %137, %138 : vector<8x128xf32>
    %cst_46 = arith.constant 0.000000e+00 : f32
    %140 = vector.broadcast %cst_46 : f32 to vector<8x128xf32>
    %141 = arith.maximumf %139, %140 : vector<8x128xf32>
    %c10_i32 = arith.constant 10 : i32
    %142 = arith.addi %3, %c10_i32 : i32
    %143 = arith.index_cast %142 : i32 to index
    %144 = memref.load %arg5[%143] : memref<32xf32, #tpu.memory_space<smem>>
    %145 = vector.broadcast %144 : f32 to vector<8x128xf32>
    %146 = arith.mulf %141, %145 : vector<8x128xf32>
    %147 = arith.addf %134, %146 : vector<8x128xf32>
    %c0_47 = arith.constant 0 : index
    %c11 = arith.constant 11 : index
    %148 = vector.load %arg3[%c0_47, %c11] : memref<8x32xf32, #tpu.memory_space<vmem>>, vector<8x1xf32>
    %c11_48 = arith.constant 11 : index
    %c0_49 = arith.constant 0 : index
    %149 = vector.load %arg4[%c11_48, %c0_49] : memref<32x128xf32, #tpu.memory_space<vmem>>, vector<1x128xf32>
    %150 = vector.broadcast %148 : vector<8x1xf32> to vector<8x128xf32>
    %151 = vector.broadcast %149 : vector<1x128xf32> to vector<8x128xf32>
    %152 = arith.addf %150, %151 : vector<8x128xf32>
    %cst_50 = arith.constant 0.000000e+00 : f32
    %153 = vector.broadcast %cst_50 : f32 to vector<8x128xf32>
    %154 = arith.maximumf %152, %153 : vector<8x128xf32>
    %c11_i32 = arith.constant 11 : i32
    %155 = arith.addi %3, %c11_i32 : i32
    %156 = arith.index_cast %155 : i32 to index
    %157 = memref.load %arg5[%156] : memref<32xf32, #tpu.memory_space<smem>>
    %158 = vector.broadcast %157 : f32 to vector<8x128xf32>
    %159 = arith.mulf %154, %158 : vector<8x128xf32>
    %160 = arith.addf %147, %159 : vector<8x128xf32>
    %c0_51 = arith.constant 0 : index
    %c12 = arith.constant 12 : index
    %161 = vector.load %arg3[%c0_51, %c12] : memref<8x32xf32, #tpu.memory_space<vmem>>, vector<8x1xf32>
    %c12_52 = arith.constant 12 : index
    %c0_53 = arith.constant 0 : index
    %162 = vector.load %arg4[%c12_52, %c0_53] : memref<32x128xf32, #tpu.memory_space<vmem>>, vector<1x128xf32>
    %163 = vector.broadcast %161 : vector<8x1xf32> to vector<8x128xf32>
    %164 = vector.broadcast %162 : vector<1x128xf32> to vector<8x128xf32>
    %165 = arith.addf %163, %164 : vector<8x128xf32>
    %cst_54 = arith.constant 0.000000e+00 : f32
    %166 = vector.broadcast %cst_54 : f32 to vector<8x128xf32>
    %167 = arith.maximumf %165, %166 : vector<8x128xf32>
    %c12_i32 = arith.constant 12 : i32
    %168 = arith.addi %3, %c12_i32 : i32
    %169 = arith.index_cast %168 : i32 to index
    %170 = memref.load %arg5[%169] : memref<32xf32, #tpu.memory_space<smem>>
    %171 = vector.broadcast %170 : f32 to vector<8x128xf32>
    %172 = arith.mulf %167, %171 : vector<8x128xf32>
    %173 = arith.addf %160, %172 : vector<8x128xf32>
    %c0_55 = arith.constant 0 : index
    %c13 = arith.constant 13 : index
    %174 = vector.load %arg3[%c0_55, %c13] : memref<8x32xf32, #tpu.memory_space<vmem>>, vector<8x1xf32>
    %c13_56 = arith.constant 13 : index
    %c0_57 = arith.constant 0 : index
    %175 = vector.load %arg4[%c13_56, %c0_57] : memref<32x128xf32, #tpu.memory_space<vmem>>, vector<1x128xf32>
    %176 = vector.broadcast %174 : vector<8x1xf32> to vector<8x128xf32>
    %177 = vector.broadcast %175 : vector<1x128xf32> to vector<8x128xf32>
    %178 = arith.addf %176, %177 : vector<8x128xf32>
    %cst_58 = arith.constant 0.000000e+00 : f32
    %179 = vector.broadcast %cst_58 : f32 to vector<8x128xf32>
    %180 = arith.maximumf %178, %179 : vector<8x128xf32>
    %c13_i32 = arith.constant 13 : i32
    %181 = arith.addi %3, %c13_i32 : i32
    %182 = arith.index_cast %181 : i32 to index
    %183 = memref.load %arg5[%182] : memref<32xf32, #tpu.memory_space<smem>>
    %184 = vector.broadcast %183 : f32 to vector<8x128xf32>
    %185 = arith.mulf %180, %184 : vector<8x128xf32>
    %186 = arith.addf %173, %185 : vector<8x128xf32>
    %c0_59 = arith.constant 0 : index
    %c14 = arith.constant 14 : index
    %187 = vector.load %arg3[%c0_59, %c14] : memref<8x32xf32, #tpu.memory_space<vmem>>, vector<8x1xf32>
    %c14_60 = arith.constant 14 : index
    %c0_61 = arith.constant 0 : index
    %188 = vector.load %arg4[%c14_60, %c0_61] : memref<32x128xf32, #tpu.memory_space<vmem>>, vector<1x128xf32>
    %189 = vector.broadcast %187 : vector<8x1xf32> to vector<8x128xf32>
    %190 = vector.broadcast %188 : vector<1x128xf32> to vector<8x128xf32>
    %191 = arith.addf %189, %190 : vector<8x128xf32>
    %cst_62 = arith.constant 0.000000e+00 : f32
    %192 = vector.broadcast %cst_62 : f32 to vector<8x128xf32>
    %193 = arith.maximumf %191, %192 : vector<8x128xf32>
    %c14_i32 = arith.constant 14 : i32
    %194 = arith.addi %3, %c14_i32 : i32
    %195 = arith.index_cast %194 : i32 to index
    %196 = memref.load %arg5[%195] : memref<32xf32, #tpu.memory_space<smem>>
    %197 = vector.broadcast %196 : f32 to vector<8x128xf32>
    %198 = arith.mulf %193, %197 : vector<8x128xf32>
    %199 = arith.addf %186, %198 : vector<8x128xf32>
    %c0_63 = arith.constant 0 : index
    %c15 = arith.constant 15 : index
    %200 = vector.load %arg3[%c0_63, %c15] : memref<8x32xf32, #tpu.memory_space<vmem>>, vector<8x1xf32>
    %c15_64 = arith.constant 15 : index
    %c0_65 = arith.constant 0 : index
    %201 = vector.load %arg4[%c15_64, %c0_65] : memref<32x128xf32, #tpu.memory_space<vmem>>, vector<1x128xf32>
    %202 = vector.broadcast %200 : vector<8x1xf32> to vector<8x128xf32>
    %203 = vector.broadcast %201 : vector<1x128xf32> to vector<8x128xf32>
    %204 = arith.addf %202, %203 : vector<8x128xf32>
    %cst_66 = arith.constant 0.000000e+00 : f32
    %205 = vector.broadcast %cst_66 : f32 to vector<8x128xf32>
    %206 = arith.maximumf %204, %205 : vector<8x128xf32>
    %c15_i32 = arith.constant 15 : i32
    %207 = arith.addi %3, %c15_i32 : i32
    %208 = arith.index_cast %207 : i32 to index
    %209 = memref.load %arg5[%208] : memref<32xf32, #tpu.memory_space<smem>>
    %210 = vector.broadcast %209 : f32 to vector<8x128xf32>
    %211 = arith.mulf %206, %210 : vector<8x128xf32>
    %212 = arith.addf %199, %211 : vector<8x128xf32>
    %c0_67 = arith.constant 0 : index
    %c16 = arith.constant 16 : index
    %213 = vector.load %arg3[%c0_67, %c16] : memref<8x32xf32, #tpu.memory_space<vmem>>, vector<8x1xf32>
    %c16_68 = arith.constant 16 : index
    %c0_69 = arith.constant 0 : index
    %214 = vector.load %arg4[%c16_68, %c0_69] : memref<32x128xf32, #tpu.memory_space<vmem>>, vector<1x128xf32>
    %215 = vector.broadcast %213 : vector<8x1xf32> to vector<8x128xf32>
    %216 = vector.broadcast %214 : vector<1x128xf32> to vector<8x128xf32>
    %217 = arith.addf %215, %216 : vector<8x128xf32>
    %cst_70 = arith.constant 0.000000e+00 : f32
    %218 = vector.broadcast %cst_70 : f32 to vector<8x128xf32>
    %219 = arith.maximumf %217, %218 : vector<8x128xf32>
    %c16_i32 = arith.constant 16 : i32
    %220 = arith.addi %3, %c16_i32 : i32
    %221 = arith.index_cast %220 : i32 to index
    %222 = memref.load %arg5[%221] : memref<32xf32, #tpu.memory_space<smem>>
    %223 = vector.broadcast %222 : f32 to vector<8x128xf32>
    %224 = arith.mulf %219, %223 : vector<8x128xf32>
    %225 = arith.addf %212, %224 : vector<8x128xf32>
    %c0_71 = arith.constant 0 : index
    %c17 = arith.constant 17 : index
    %226 = vector.load %arg3[%c0_71, %c17] : memref<8x32xf32, #tpu.memory_space<vmem>>, vector<8x1xf32>
    %c17_72 = arith.constant 17 : index
    %c0_73 = arith.constant 0 : index
    %227 = vector.load %arg4[%c17_72, %c0_73] : memref<32x128xf32, #tpu.memory_space<vmem>>, vector<1x128xf32>
    %228 = vector.broadcast %226 : vector<8x1xf32> to vector<8x128xf32>
    %229 = vector.broadcast %227 : vector<1x128xf32> to vector<8x128xf32>
    %230 = arith.addf %228, %229 : vector<8x128xf32>
    %cst_74 = arith.constant 0.000000e+00 : f32
    %231 = vector.broadcast %cst_74 : f32 to vector<8x128xf32>
    %232 = arith.maximumf %230, %231 : vector<8x128xf32>
    %c17_i32 = arith.constant 17 : i32
    %233 = arith.addi %3, %c17_i32 : i32
    %234 = arith.index_cast %233 : i32 to index
    %235 = memref.load %arg5[%234] : memref<32xf32, #tpu.memory_space<smem>>
    %236 = vector.broadcast %235 : f32 to vector<8x128xf32>
    %237 = arith.mulf %232, %236 : vector<8x128xf32>
    %238 = arith.addf %225, %237 : vector<8x128xf32>
    %c0_75 = arith.constant 0 : index
    %c18 = arith.constant 18 : index
    %239 = vector.load %arg3[%c0_75, %c18] : memref<8x32xf32, #tpu.memory_space<vmem>>, vector<8x1xf32>
    %c18_76 = arith.constant 18 : index
    %c0_77 = arith.constant 0 : index
    %240 = vector.load %arg4[%c18_76, %c0_77] : memref<32x128xf32, #tpu.memory_space<vmem>>, vector<1x128xf32>
    %241 = vector.broadcast %239 : vector<8x1xf32> to vector<8x128xf32>
    %242 = vector.broadcast %240 : vector<1x128xf32> to vector<8x128xf32>
    %243 = arith.addf %241, %242 : vector<8x128xf32>
    %cst_78 = arith.constant 0.000000e+00 : f32
    %244 = vector.broadcast %cst_78 : f32 to vector<8x128xf32>
    %245 = arith.maximumf %243, %244 : vector<8x128xf32>
    %c18_i32 = arith.constant 18 : i32
    %246 = arith.addi %3, %c18_i32 : i32
    %247 = arith.index_cast %246 : i32 to index
    %248 = memref.load %arg5[%247] : memref<32xf32, #tpu.memory_space<smem>>
    %249 = vector.broadcast %248 : f32 to vector<8x128xf32>
    %250 = arith.mulf %245, %249 : vector<8x128xf32>
    %251 = arith.addf %238, %250 : vector<8x128xf32>
    %c0_79 = arith.constant 0 : index
    %c19 = arith.constant 19 : index
    %252 = vector.load %arg3[%c0_79, %c19] : memref<8x32xf32, #tpu.memory_space<vmem>>, vector<8x1xf32>
    %c19_80 = arith.constant 19 : index
    %c0_81 = arith.constant 0 : index
    %253 = vector.load %arg4[%c19_80, %c0_81] : memref<32x128xf32, #tpu.memory_space<vmem>>, vector<1x128xf32>
    %254 = vector.broadcast %252 : vector<8x1xf32> to vector<8x128xf32>
    %255 = vector.broadcast %253 : vector<1x128xf32> to vector<8x128xf32>
    %256 = arith.addf %254, %255 : vector<8x128xf32>
    %cst_82 = arith.constant 0.000000e+00 : f32
    %257 = vector.broadcast %cst_82 : f32 to vector<8x128xf32>
    %258 = arith.maximumf %256, %257 : vector<8x128xf32>
    %c19_i32 = arith.constant 19 : i32
    %259 = arith.addi %3, %c19_i32 : i32
    %260 = arith.index_cast %259 : i32 to index
    %261 = memref.load %arg5[%260] : memref<32xf32, #tpu.memory_space<smem>>
    %262 = vector.broadcast %261 : f32 to vector<8x128xf32>
    %263 = arith.mulf %258, %262 : vector<8x128xf32>
    %264 = arith.addf %251, %263 : vector<8x128xf32>
    %c0_83 = arith.constant 0 : index
    %c20 = arith.constant 20 : index
    %265 = vector.load %arg3[%c0_83, %c20] : memref<8x32xf32, #tpu.memory_space<vmem>>, vector<8x1xf32>
    %c20_84 = arith.constant 20 : index
    %c0_85 = arith.constant 0 : index
    %266 = vector.load %arg4[%c20_84, %c0_85] : memref<32x128xf32, #tpu.memory_space<vmem>>, vector<1x128xf32>
    %267 = vector.broadcast %265 : vector<8x1xf32> to vector<8x128xf32>
    %268 = vector.broadcast %266 : vector<1x128xf32> to vector<8x128xf32>
    %269 = arith.addf %267, %268 : vector<8x128xf32>
    %cst_86 = arith.constant 0.000000e+00 : f32
    %270 = vector.broadcast %cst_86 : f32 to vector<8x128xf32>
    %271 = arith.maximumf %269, %270 : vector<8x128xf32>
    %c20_i32 = arith.constant 20 : i32
    %272 = arith.addi %3, %c20_i32 : i32
    %273 = arith.index_cast %272 : i32 to index
    %274 = memref.load %arg5[%273] : memref<32xf32, #tpu.memory_space<smem>>
    %275 = vector.broadcast %274 : f32 to vector<8x128xf32>
    %276 = arith.mulf %271, %275 : vector<8x128xf32>
    %277 = arith.addf %264, %276 : vector<8x128xf32>
    %c0_87 = arith.constant 0 : index
    %c21 = arith.constant 21 : index
    %278 = vector.load %arg3[%c0_87, %c21] : memref<8x32xf32, #tpu.memory_space<vmem>>, vector<8x1xf32>
    %c21_88 = arith.constant 21 : index
    %c0_89 = arith.constant 0 : index
    %279 = vector.load %arg4[%c21_88, %c0_89] : memref<32x128xf32, #tpu.memory_space<vmem>>, vector<1x128xf32>
    %280 = vector.broadcast %278 : vector<8x1xf32> to vector<8x128xf32>
    %281 = vector.broadcast %279 : vector<1x128xf32> to vector<8x128xf32>
    %282 = arith.addf %280, %281 : vector<8x128xf32>
    %cst_90 = arith.constant 0.000000e+00 : f32
    %283 = vector.broadcast %cst_90 : f32 to vector<8x128xf32>
    %284 = arith.maximumf %282, %283 : vector<8x128xf32>
    %c21_i32 = arith.constant 21 : i32
    %285 = arith.addi %3, %c21_i32 : i32
    %286 = arith.index_cast %285 : i32 to index
    %287 = memref.load %arg5[%286] : memref<32xf32, #tpu.memory_space<smem>>
    %288 = vector.broadcast %287 : f32 to vector<8x128xf32>
    %289 = arith.mulf %284, %288 : vector<8x128xf32>
    %290 = arith.addf %277, %289 : vector<8x128xf32>
    %c0_91 = arith.constant 0 : index
    %c22 = arith.constant 22 : index
    %291 = vector.load %arg3[%c0_91, %c22] : memref<8x32xf32, #tpu.memory_space<vmem>>, vector<8x1xf32>
    %c22_92 = arith.constant 22 : index
    %c0_93 = arith.constant 0 : index
    %292 = vector.load %arg4[%c22_92, %c0_93] : memref<32x128xf32, #tpu.memory_space<vmem>>, vector<1x128xf32>
    %293 = vector.broadcast %291 : vector<8x1xf32> to vector<8x128xf32>
    %294 = vector.broadcast %292 : vector<1x128xf32> to vector<8x128xf32>
    %295 = arith.addf %293, %294 : vector<8x128xf32>
    %cst_94 = arith.constant 0.000000e+00 : f32
    %296 = vector.broadcast %cst_94 : f32 to vector<8x128xf32>
    %297 = arith.maximumf %295, %296 : vector<8x128xf32>
    %c22_i32 = arith.constant 22 : i32
    %298 = arith.addi %3, %c22_i32 : i32
    %299 = arith.index_cast %298 : i32 to index
    %300 = memref.load %arg5[%299] : memref<32xf32, #tpu.memory_space<smem>>
    %301 = vector.broadcast %300 : f32 to vector<8x128xf32>
    %302 = arith.mulf %297, %301 : vector<8x128xf32>
    %303 = arith.addf %290, %302 : vector<8x128xf32>
    %c0_95 = arith.constant 0 : index
    %c23 = arith.constant 23 : index
    %304 = vector.load %arg3[%c0_95, %c23] : memref<8x32xf32, #tpu.memory_space<vmem>>, vector<8x1xf32>
    %c23_96 = arith.constant 23 : index
    %c0_97 = arith.constant 0 : index
    %305 = vector.load %arg4[%c23_96, %c0_97] : memref<32x128xf32, #tpu.memory_space<vmem>>, vector<1x128xf32>
    %306 = vector.broadcast %304 : vector<8x1xf32> to vector<8x128xf32>
    %307 = vector.broadcast %305 : vector<1x128xf32> to vector<8x128xf32>
    %308 = arith.addf %306, %307 : vector<8x128xf32>
    %cst_98 = arith.constant 0.000000e+00 : f32
    %309 = vector.broadcast %cst_98 : f32 to vector<8x128xf32>
    %310 = arith.maximumf %308, %309 : vector<8x128xf32>
    %c23_i32 = arith.constant 23 : i32
    %311 = arith.addi %3, %c23_i32 : i32
    %312 = arith.index_cast %311 : i32 to index
    %313 = memref.load %arg5[%312] : memref<32xf32, #tpu.memory_space<smem>>
    %314 = vector.broadcast %313 : f32 to vector<8x128xf32>
    %315 = arith.mulf %310, %314 : vector<8x128xf32>
    %316 = arith.addf %303, %315 : vector<8x128xf32>
    %c0_99 = arith.constant 0 : index
    %c24 = arith.constant 24 : index
    %317 = vector.load %arg3[%c0_99, %c24] : memref<8x32xf32, #tpu.memory_space<vmem>>, vector<8x1xf32>
    %c24_100 = arith.constant 24 : index
    %c0_101 = arith.constant 0 : index
    %318 = vector.load %arg4[%c24_100, %c0_101] : memref<32x128xf32, #tpu.memory_space<vmem>>, vector<1x128xf32>
    %319 = vector.broadcast %317 : vector<8x1xf32> to vector<8x128xf32>
    %320 = vector.broadcast %318 : vector<1x128xf32> to vector<8x128xf32>
    %321 = arith.addf %319, %320 : vector<8x128xf32>
    %cst_102 = arith.constant 0.000000e+00 : f32
    %322 = vector.broadcast %cst_102 : f32 to vector<8x128xf32>
    %323 = arith.maximumf %321, %322 : vector<8x128xf32>
    %c24_i32 = arith.constant 24 : i32
    %324 = arith.addi %3, %c24_i32 : i32
    %325 = arith.index_cast %324 : i32 to index
    %326 = memref.load %arg5[%325] : memref<32xf32, #tpu.memory_space<smem>>
    %327 = vector.broadcast %326 : f32 to vector<8x128xf32>
    %328 = arith.mulf %323, %327 : vector<8x128xf32>
    %329 = arith.addf %316, %328 : vector<8x128xf32>
    %c0_103 = arith.constant 0 : index
    %c25 = arith.constant 25 : index
    %330 = vector.load %arg3[%c0_103, %c25] : memref<8x32xf32, #tpu.memory_space<vmem>>, vector<8x1xf32>
    %c25_104 = arith.constant 25 : index
    %c0_105 = arith.constant 0 : index
    %331 = vector.load %arg4[%c25_104, %c0_105] : memref<32x128xf32, #tpu.memory_space<vmem>>, vector<1x128xf32>
    %332 = vector.broadcast %330 : vector<8x1xf32> to vector<8x128xf32>
    %333 = vector.broadcast %331 : vector<1x128xf32> to vector<8x128xf32>
    %334 = arith.addf %332, %333 : vector<8x128xf32>
    %cst_106 = arith.constant 0.000000e+00 : f32
    %335 = vector.broadcast %cst_106 : f32 to vector<8x128xf32>
    %336 = arith.maximumf %334, %335 : vector<8x128xf32>
    %c25_i32 = arith.constant 25 : i32
    %337 = arith.addi %3, %c25_i32 : i32
    %338 = arith.index_cast %337 : i32 to index
    %339 = memref.load %arg5[%338] : memref<32xf32, #tpu.memory_space<smem>>
    %340 = vector.broadcast %339 : f32 to vector<8x128xf32>
    %341 = arith.mulf %336, %340 : vector<8x128xf32>
    %342 = arith.addf %329, %341 : vector<8x128xf32>
    %c0_107 = arith.constant 0 : index
    %c26 = arith.constant 26 : index
    %343 = vector.load %arg3[%c0_107, %c26] : memref<8x32xf32, #tpu.memory_space<vmem>>, vector<8x1xf32>
    %c26_108 = arith.constant 26 : index
    %c0_109 = arith.constant 0 : index
    %344 = vector.load %arg4[%c26_108, %c0_109] : memref<32x128xf32, #tpu.memory_space<vmem>>, vector<1x128xf32>
    %345 = vector.broadcast %343 : vector<8x1xf32> to vector<8x128xf32>
    %346 = vector.broadcast %344 : vector<1x128xf32> to vector<8x128xf32>
    %347 = arith.addf %345, %346 : vector<8x128xf32>
    %cst_110 = arith.constant 0.000000e+00 : f32
    %348 = vector.broadcast %cst_110 : f32 to vector<8x128xf32>
    %349 = arith.maximumf %347, %348 : vector<8x128xf32>
    %c26_i32 = arith.constant 26 : i32
    %350 = arith.addi %3, %c26_i32 : i32
    %351 = arith.index_cast %350 : i32 to index
    %352 = memref.load %arg5[%351] : memref<32xf32, #tpu.memory_space<smem>>
    %353 = vector.broadcast %352 : f32 to vector<8x128xf32>
    %354 = arith.mulf %349, %353 : vector<8x128xf32>
    %355 = arith.addf %342, %354 : vector<8x128xf32>
    %c0_111 = arith.constant 0 : index
    %c27 = arith.constant 27 : index
    %356 = vector.load %arg3[%c0_111, %c27] : memref<8x32xf32, #tpu.memory_space<vmem>>, vector<8x1xf32>
    %c27_112 = arith.constant 27 : index
    %c0_113 = arith.constant 0 : index
    %357 = vector.load %arg4[%c27_112, %c0_113] : memref<32x128xf32, #tpu.memory_space<vmem>>, vector<1x128xf32>
    %358 = vector.broadcast %356 : vector<8x1xf32> to vector<8x128xf32>
    %359 = vector.broadcast %357 : vector<1x128xf32> to vector<8x128xf32>
    %360 = arith.addf %358, %359 : vector<8x128xf32>
    %cst_114 = arith.constant 0.000000e+00 : f32
    %361 = vector.broadcast %cst_114 : f32 to vector<8x128xf32>
    %362 = arith.maximumf %360, %361 : vector<8x128xf32>
    %c27_i32 = arith.constant 27 : i32
    %363 = arith.addi %3, %c27_i32 : i32
    %364 = arith.index_cast %363 : i32 to index
    %365 = memref.load %arg5[%364] : memref<32xf32, #tpu.memory_space<smem>>
    %366 = vector.broadcast %365 : f32 to vector<8x128xf32>
    %367 = arith.mulf %362, %366 : vector<8x128xf32>
    %368 = arith.addf %355, %367 : vector<8x128xf32>
    %c0_115 = arith.constant 0 : index
    %c28 = arith.constant 28 : index
    %369 = vector.load %arg3[%c0_115, %c28] : memref<8x32xf32, #tpu.memory_space<vmem>>, vector<8x1xf32>
    %c28_116 = arith.constant 28 : index
    %c0_117 = arith.constant 0 : index
    %370 = vector.load %arg4[%c28_116, %c0_117] : memref<32x128xf32, #tpu.memory_space<vmem>>, vector<1x128xf32>
    %371 = vector.broadcast %369 : vector<8x1xf32> to vector<8x128xf32>
    %372 = vector.broadcast %370 : vector<1x128xf32> to vector<8x128xf32>
    %373 = arith.addf %371, %372 : vector<8x128xf32>
    %cst_118 = arith.constant 0.000000e+00 : f32
    %374 = vector.broadcast %cst_118 : f32 to vector<8x128xf32>
    %375 = arith.maximumf %373, %374 : vector<8x128xf32>
    %c28_i32 = arith.constant 28 : i32
    %376 = arith.addi %3, %c28_i32 : i32
    %377 = arith.index_cast %376 : i32 to index
    %378 = memref.load %arg5[%377] : memref<32xf32, #tpu.memory_space<smem>>
    %379 = vector.broadcast %378 : f32 to vector<8x128xf32>
    %380 = arith.mulf %375, %379 : vector<8x128xf32>
    %381 = arith.addf %368, %380 : vector<8x128xf32>
    %c0_119 = arith.constant 0 : index
    %c29 = arith.constant 29 : index
    %382 = vector.load %arg3[%c0_119, %c29] : memref<8x32xf32, #tpu.memory_space<vmem>>, vector<8x1xf32>
    %c29_120 = arith.constant 29 : index
    %c0_121 = arith.constant 0 : index
    %383 = vector.load %arg4[%c29_120, %c0_121] : memref<32x128xf32, #tpu.memory_space<vmem>>, vector<1x128xf32>
    %384 = vector.broadcast %382 : vector<8x1xf32> to vector<8x128xf32>
    %385 = vector.broadcast %383 : vector<1x128xf32> to vector<8x128xf32>
    %386 = arith.addf %384, %385 : vector<8x128xf32>
    %cst_122 = arith.constant 0.000000e+00 : f32
    %387 = vector.broadcast %cst_122 : f32 to vector<8x128xf32>
    %388 = arith.maximumf %386, %387 : vector<8x128xf32>
    %c29_i32 = arith.constant 29 : i32
    %389 = arith.addi %3, %c29_i32 : i32
    %390 = arith.index_cast %389 : i32 to index
    %391 = memref.load %arg5[%390] : memref<32xf32, #tpu.memory_space<smem>>
    %392 = vector.broadcast %391 : f32 to vector<8x128xf32>
    %393 = arith.mulf %388, %392 : vector<8x128xf32>
    %394 = arith.addf %381, %393 : vector<8x128xf32>
    %c0_123 = arith.constant 0 : index
    %c30 = arith.constant 30 : index
    %395 = vector.load %arg3[%c0_123, %c30] : memref<8x32xf32, #tpu.memory_space<vmem>>, vector<8x1xf32>
    %c30_124 = arith.constant 30 : index
    %c0_125 = arith.constant 0 : index
    %396 = vector.load %arg4[%c30_124, %c0_125] : memref<32x128xf32, #tpu.memory_space<vmem>>, vector<1x128xf32>
    %397 = vector.broadcast %395 : vector<8x1xf32> to vector<8x128xf32>
    %398 = vector.broadcast %396 : vector<1x128xf32> to vector<8x128xf32>
    %399 = arith.addf %397, %398 : vector<8x128xf32>
    %cst_126 = arith.constant 0.000000e+00 : f32
    %400 = vector.broadcast %cst_126 : f32 to vector<8x128xf32>
    %401 = arith.maximumf %399, %400 : vector<8x128xf32>
    %c30_i32 = arith.constant 30 : i32
    %402 = arith.addi %3, %c30_i32 : i32
    %403 = arith.index_cast %402 : i32 to index
    %404 = memref.load %arg5[%403] : memref<32xf32, #tpu.memory_space<smem>>
    %405 = vector.broadcast %404 : f32 to vector<8x128xf32>
    %406 = arith.mulf %401, %405 : vector<8x128xf32>
    %407 = arith.addf %394, %406 : vector<8x128xf32>
    %c0_127 = arith.constant 0 : index
    %c31 = arith.constant 31 : index
    %408 = vector.load %arg3[%c0_127, %c31] : memref<8x32xf32, #tpu.memory_space<vmem>>, vector<8x1xf32>
    %c31_128 = arith.constant 31 : index
    %c0_129 = arith.constant 0 : index
    %409 = vector.load %arg4[%c31_128, %c0_129] : memref<32x128xf32, #tpu.memory_space<vmem>>, vector<1x128xf32>
    %410 = vector.broadcast %408 : vector<8x1xf32> to vector<8x128xf32>
    %411 = vector.broadcast %409 : vector<1x128xf32> to vector<8x128xf32>
    %412 = arith.addf %410, %411 : vector<8x128xf32>
    %cst_130 = arith.constant 0.000000e+00 : f32
    %413 = vector.broadcast %cst_130 : f32 to vector<8x128xf32>
    %414 = arith.maximumf %412, %413 : vector<8x128xf32>
    %c31_i32 = arith.constant 31 : i32
    %415 = arith.addi %3, %c31_i32 : i32
    %416 = arith.index_cast %415 : i32 to index
    %417 = memref.load %arg5[%416] : memref<32xf32, #tpu.memory_space<smem>>
    %418 = vector.broadcast %417 : f32 to vector<8x128xf32>
    %419 = arith.mulf %414, %418 : vector<8x128xf32>
    %420 = arith.addf %407, %419 : vector<8x128xf32>
    %c0_131 = arith.constant 0 : index
    %c0_132 = arith.constant 0 : index
    %421 = vector.load %arg8[%c0_131, %c0_132] : memref<8x128xf32, #tpu.memory_space<vmem>>, vector<8x128xf32>
    tpu.vector_store %arg8[%c0_131, %c0_132], %420 {strides = array<i32>} : memref<8x128xf32, #tpu.memory_space<vmem>>, vector<8x128xf32>,
    %c0_i32_133 = arith.constant 0 : i32
    %422 = arith.cmpi eq, %arg2, %c0_i32_133 : i32
    %423 = arith.extui %422 : i1 to i32
    %c0_i32_134 = arith.constant 0 : i32
    %424 = arith.cmpi ne, %423, %c0_i32_134 : i32
    scf.if %424 {
      %c0_135 = arith.constant 0 : index
      %425 = memref.load %arg6[%c0_135] : memref<1xf32, #tpu.memory_space<smem>>
      %426 = vector.broadcast %425 : f32 to vector<8x128xf32>
      %427 = arith.addf %420, %426 : vector<8x128xf32>
      %428 = arith.negf %427 : vector<8x128xf32>
      %429 = math.exp %428 : vector<8x128xf32>
      %cst_136 = arith.constant 1.000000e+00 : f32
      %430 = vector.broadcast %cst_136 : f32 to vector<8x128xf32>
      %431 = arith.addf %430, %429 : vector<8x128xf32>
      %432 = arith.divf %430, %431 : vector<8x128xf32>
      %c0_137 = arith.constant 0 : index
      %c0_138 = arith.constant 0 : index
      %433 = vector.load %arg7[%c0_137, %c0_138] : memref<8x128xf32, #tpu.memory_space<vmem>>, vector<8x128xf32>
      tpu.vector_store %arg7[%c0_137, %c0_138], %432 {strides = array<i32>} : memref<8x128xf32, #tpu.memory_space<vmem>>, vector<8x128xf32>,
    } else {
    }
    return
  }
  func.func @transform_0(%arg0: i32, %arg1: i32, %arg2: i32) -> (i32, i32) {
    %c0_i32 = arith.constant 0 : i32
    return %arg0, %arg2 : i32, i32
  }
  func.func @transform_1(%arg0: i32, %arg1: i32, %arg2: i32) -> (i32, i32) {
    %c0_i32 = arith.constant 0 : i32
    return %arg2, %arg1 : i32, i32
  }
  func.func @transform_2(%arg0: i32, %arg1: i32, %arg2: i32) -> i32 {
    %c0_i32 = arith.constant 0 : i32
    %c0_i32_0 = arith.constant 0 : i32
    return %c0_i32 : i32
  }
  func.func @transform_3(%arg0: i32, %arg1: i32, %arg2: i32) -> i32 {
    %c0_i32 = arith.constant 0 : i32
    %c0_i32_0 = arith.constant 0 : i32
    return %c0_i32 : i32
  }
  func.func @transform_4(%arg0: i32, %arg1: i32, %arg2: i32) -> (i32, i32) {
    %c0_i32 = arith.constant 0 : i32
    return %arg0, %arg1 : i32, i32
  }
}

</mosaic_0001>

<llo_original>
// kernel: relation_module_forward.1
$region0: #{relation_module_forward.1}
  #allocation0 [shape = 'u32[]', space=smem, size = 0x4, offset = 0x4, fixed_abs, tag = 'smem constant byte address 0x4 - core index']
  #allocation1 [shape = 'u32[72,128]{1,0:T(1,128)}', space=vmem, size = 0x9000, scoped, tag = 'internal scratch']
  #allocation2 [shape = 'f32[8,128]{1,0:T(8,128)}', space=vmem, size = 0x1000, scoped, tag = 'scratch operand']
  #allocation3 [shape = 'f32[1]{0:T(128)S(6)}', space=smem, size = 0x200, scoped, tag = 'scoped memory for relation_module_forward.1']
  %s0 = inlined_call_operand.vmem [shape: f32[8,32], index: 0, kind: input, shape index: {}]
  %s1 = inlined_call_operand.vmem [shape: f32[32,128], index: 1, kind: input, shape index: {}]
  %s2 = inlined_call_operand.vmem [shape: f32[32], index: 2, kind: input, shape index: {}]
  %s3 = inlined_call_operand.<no memory space> [shape: f32[1], index: 3, kind: input, shape index: {}]
  %s4 = inlined_call_operand.hbm [shape: f32[8,128], index: 4, kind: output, shape index: {}]
  %s5 = sld [smem:[#allocation0]]
  $region38: #{relation_module_forward.1} parent=0
    _
  %s7 = ssub.s32 1, %s5
  %s8 = scalar_select 0, %s7, %s5
  %9 = sst [smem:[#allocation3]] %s3
  $region1: #{relation_module_forward.1} parent=0
    #allocation4 [shape = 'u8[512]{0}', space=smem, size = 0x200, scoped, tag = 'input window, operand 2, single buffered']
    #allocation5 [shape = 's32[1]{0}', space=sflag, size = 0x4, scoped, tag = 'scoped memory for relation_module_forward.1']
    #allocation6 [shape = 's32[1]{0}', space=sflag, size = 0x4, scoped, tag = 'scoped memory for relation_module_forward.1']
    #allocation7 [shape = 'u8[4096]{0}', space=vmem, size = 0x1000, scoped, tag = 'output window, operand 0, single buffered']
    %10 = vsyncpa [#allocation6], 0
    %11 = vsyncpa [#allocation5], 0
    // Predicated region
    $region2: #{relation_module_forward.1} parent=1 // pred_check
      _
    $region3: #{relation_module_forward.1} parent=1 // pred_check_branch
      %13 = sbr.rel (0) target = $region5
    $region4: #{relation_module_forward.1} parent=1 // pred_region
      _
    $region5: #{relation_module_forward.1} parent=1 // pred_fallthru
      _
    // Predicated region
    $region6: #{relation_module_forward.1} parent=1 // pred_check
      _
    $region7: #{relation_module_forward.1} parent=1 // pred_check_branch
      %15 = sbr.rel (0) target = $region9
    $region8: #{relation_module_forward.1} parent=1 // pred_region
      _
    $region9: #{relation_module_forward.1} parent=1 // pred_fallthru
      _
    // Predicated region
    $region10: #{relation_module_forward.1} parent=1 // pred_check
      _
    $region11: #{relation_module_forward.1} parent=1 // pred_check_branch
      %17 = sbr.rel (0) target = $region13
    $region12: #{relation_module_forward.1} parent=1 // pred_region
      %19 = vsyncadd [#allocation6], 0
      %s21 = sshll.u32 %s2, 4
      %s22 = int_to_ptr.vmem [resolvable:$true] %s21
      %24 = dma.vmem_to_smem %s22, 16, [#allocation4], [#allocation6]
    $region13: #{relation_module_forward.1} parent=1 // pred_fallthru
      _
    // Predicated region
    $region14: #{relation_module_forward.1} parent=1 // pred_check
      _
    $region15: #{relation_module_forward.1} parent=1 // pred_check_branch
      %26 = sbr.rel (0) target = $region17
    $region16: #{relation_module_forward.1} parent=1 // pred_region
      _
    $region17: #{relation_module_forward.1} parent=1 // pred_fallthru
      _
    // Predicated region
    $region18: #{relation_module_forward.1} parent=1 // pred_check
      _
    $region19: #{relation_module_forward.1} parent=1 // pred_check_branch
      %28 = sbr.rel (0) target = $region21
    $region20: #{relation_module_forward.1} parent=1 // pred_region
      %30 = dma.done [#allocation6], 16
    $region21: #{relation_module_forward.1} parent=1 // pred_fallthru
      _
    %31 = sfence
    %p32 = scmp.eq.s32.totalorder 0, 0
    // Predicated region
    $region22: #{relation_module_forward.1} parent=1 // pred_check
      %p33 = pneg %p32
    $region23: #{relation_module_forward.1} parent=1 // pred_check_branch
      %35 = sbr.rel (%p33) target = $region25
    $region24: #{relation_module_forward.1} parent=1 // pred_region
      %36 = vst [vmem:[#allocation2] sm:$0xff] 0.0
    $region25: #{relation_module_forward.1} parent=1 // pred_fallthru
      _
    %s37 = smul.u32 0, 32
    %v38 = vld [vmem:[#allocation2] sm:$0xff]
    %v39 = vld [vmem:[%s0] sm:$0xff]
    %v40 = vld [vmem:[%s1] sm:$0x1]
    %42 = vset.pattern.permute.xlu0 0
    %43 = vperm.xlu0 %42, %v39
    %v44 = vpop.permute.xlu0 %43
    %v46 = vperm.slane %v40, 0
    %v47 = vadd.f32 %v44, %v46
    %v48 = vmax.f32 %v47, 0.0
    %s49 = sld [smem:[#allocation4 + %s37]]
    %v50 = vstv %s49
    %v51 = vmul.f32 %v48, %v50
    %v52 = vadd.f32 %v38, %v51
    %v53 = vld [vmem:[%s1 + $0x1] sm:$0x1]
    %54 = vset.pattern.permute.xlu0 1
    %55 = vperm.xlu0 %54, %v39
    %v56 = vpop.permute.xlu0 %55
    %v58 = vperm.slane %v53, 0
    %v59 = vadd.f32 %v56, %v58
    %v60 = vmax.f32 %v59, 0.0
    %s61 = sadd.s32 %s37, 1
    %s62 = sld [smem:[#allocation4 + %s61]]
    %v63 = vstv %s62
    %v64 = vmul.f32 %v60, %v63
    %v65 = vadd.f32 %v52, %v64
    %v66 = vld [vmem:[%s1 + $0x2] sm:$0x1]
    %67 = vset.pattern.permute.xlu0 2
    %68 = vperm.xlu0 %67, %v39
    %v69 = vpop.permute.xlu0 %68
    %v71 = vperm.slane %v66, 0
    %v72 = vadd.f32 %v69, %v71
    %v73 = vmax.f32 %v72, 0.0
    %s74 = sadd.s32 %s37, 2
    %s75 = sld [smem:[#allocation4 + %s74]]
    %v76 = vstv %s75
    %v77 = vmul.f32 %v73, %v76
    %v78 = vadd.f32 %v65, %v77
    %v79 = vld [vmem:[%s1 + $0x3] sm:$0x1]
    %80 = vset.pattern.permute.xlu0 3
    %81 = vperm.xlu0 %80, %v39
    %v82 = vpop.permute.xlu0 %81
    %v84 = vperm.slane %v79, 0
    %v85 = vadd.f32 %v82, %v84
    %v86 = vmax.f32 %v85, 0.0
    %s87 = sadd.s32 %s37, 3
    %s88 = sld [smem:[#allocation4 + %s87]]
    %v89 = vstv %s88
    %v90 = vmul.f32 %v86, %v89
    %v91 = vadd.f32 %v78, %v90
    %v92 = vld [vmem:[%s1 + $0x4] sm:$0x1]
    %93 = vset.pattern.permute.xlu0 4
    %94 = vperm.xlu0 %93, %v39
    %v95 = vpop.permute.xlu0 %94
    %v97 = vperm.slane %v92, 0
    %v98 = vadd.f32 %v95, %v97
    %v99 = vmax.f32 %v98, 0.0
    %s100 = sadd.s32 %s37, 4
    %s101 = sld [smem:[#allocation4 + %s100]]
    %v102 = vstv %s101
    %v103 = vmul.f32 %v99, %v102
    %v104 = vadd.f32 %v91, %v103
    %v105 = vld [vmem:[%s1 + $0x5] sm:$0x1]
    %106 = vset.pattern.permute.xlu0 5
    %107 = vperm.xlu0 %106, %v39
    %v108 = vpop.permute.xlu0 %107
    %v110 = vperm.slane %v105, 0
    %v111 = vadd.f32 %v108, %v110
    %v112 = vmax.f32 %v111, 0.0
    %s113 = sadd.s32 %s37, 5
    %s114 = sld [smem:[#allocation4 + %s113]]
    %v115 = vstv %s114
    %v116 = vmul.f32 %v112, %v115
    %v117 = vadd.f32 %v104, %v116
    %v118 = vld [vmem:[%s1 + $0x6] sm:$0x1]
    %119 = vset.pattern.permute.xlu0 6
    %120 = vperm.xlu0 %119, %v39
    %v121 = vpop.permute.xlu0 %120
    %v123 = vperm.slane %v118, 0
    %v124 = vadd.f32 %v121, %v123
    %v125 = vmax.f32 %v124, 0.0
    %s126 = sadd.s32 %s37, 6
    %s127 = sld [smem:[#allocation4 + %s126]]
    %v128 = vstv %s127
    %v129 = vmul.f32 %v125, %v128
    %v130 = vadd.f32 %v117, %v129
    %v131 = vld [vmem:[%s1 + $0x7] sm:$0x1]
    %132 = vset.pattern.permute.xlu0 7
    %133 = vperm.xlu0 %132, %v39
    %v134 = vpop.permute.xlu0 %133
    %v136 = vperm.slane %v131, 0
    %v137 = vadd.f32 %v134, %v136
    %v138 = vmax.f32 %v137, 0.0
    %s139 = sadd.s32 %s37, 7
    %s140 = sld [smem:[#allocation4 + %s139]]
    %v141 = vstv %s140
    %v142 = vmul.f32 %v138, %v141
    %v143 = vadd.f32 %v130, %v142
    %v144 = vld [vmem:[%s1 + $0x8] sm:$0x1]
    %145 = vset.pattern.permute.xlu0 8
    %146 = vperm.xlu0 %145, %v39
    %v147 = vpop.permute.xlu0 %146
    %v149 = vperm.slane %v144, 0
    %v150 = vadd.f32 %v147, %v149
    %v151 = vmax.f32 %v150, 0.0
    %s152 = sadd.s32 %s37, 8
    %s153 = sld [smem:[#allocation4 + %s152]]
    %v154 = vstv %s153
    %v155 = vmul.f32 %v151, %v154
    %v156 = vadd.f32 %v143, %v155
    %v157 = vld [vmem:[%s1 + $0x9] sm:$0x1]
    %158 = vset.pattern.permute.xlu0 9
    %159 = vperm.xlu0 %158, %v39
    %v160 = vpop.permute.xlu0 %159
    %v162 = vperm.slane %v157, 0
    %v163 = vadd.f32 %v160, %v162
    %v164 = vmax.f32 %v163, 0.0
    %s165 = sadd.s32 %s37, 9
    %s166 = sld [smem:[#allocation4 + %s165]]
    %v167 = vstv %s166
    %v168 = vmul.f32 %v164, %v167
    %v169 = vadd.f32 %v156, %v168
    %v170 = vld [vmem:[%s1 + $0xa] sm:$0x1]
    %171 = vset.pattern.permute.xlu0 10
    %172 = vperm.xlu0 %171, %v39
    %v173 = vpop.permute.xlu0 %172
    %v175 = vperm.slane %v170, 0
    %v176 = vadd.f32 %v173, %v175
    %v177 = vmax.f32 %v176, 0.0
    %s178 = sadd.s32 %s37, 10
    %s179 = sld [smem:[#allocation4 + %s178]]
    %v180 = vstv %s179
    %v181 = vmul.f32 %v177, %v180
    %v182 = vadd.f32 %v169, %v181
    %v183 = vld [vmem:[%s1 + $0xb] sm:$0x1]
    %184 = vset.pattern.permute.xlu0 11
    %185 = vperm.xlu0 %184, %v39
    %v186 = vpop.permute.xlu0 %185
    %v188 = vperm.slane %v183, 0
    %v189 = vadd.f32 %v186, %v188
    %v190 = vmax.f32 %v189, 0.0
    %s191 = sadd.s32 %s37, 11
    %s192 = sld [smem:[#allocation4 + %s191]]
    %v193 = vstv %s192
    %v194 = vmul.f32 %v190, %v193
    %v195 = vadd.f32 %v182, %v194
    %v196 = vld [vmem:[%s1 + $0xc] sm:$0x1]
    %197 = vset.pattern.permute.xlu0 12
    %198 = vperm.xlu0 %197, %v39
    %v199 = vpop.permute.xlu0 %198
    %v201 = vperm.slane %v196, 0
    %v202 = vadd.f32 %v199, %v201
    %v203 = vmax.f32 %v202, 0.0
    %s204 = sadd.s32 %s37, 12
    %s205 = sld [smem:[#allocation4 + %s204]]
    %v206 = vstv %s205
    %v207 = vmul.f32 %v203, %v206
    %v208 = vadd.f32 %v195, %v207
    %v209 = vld [vmem:[%s1 + $0xd] sm:$0x1]
    %210 = vset.pattern.permute.xlu0 13
    %211 = vperm.xlu0 %210, %v39
    %v212 = vpop.permute.xlu0 %211
    %v214 = vperm.slane %v209, 0
    %v215 = vadd.f32 %v212, %v214
    %v216 = vmax.f32 %v215, 0.0
    %s217 = sadd.s32 %s37, 13
    %s218 = sld [smem:[#allocation4 + %s217]]
    %v219 = vstv %s218
    %v220 = vmul.f32 %v216, %v219
    %v221 = vadd.f32 %v208, %v220
    %v222 = vld [vmem:[%s1 + $0xe] sm:$0x1]
    %223 = vset.pattern.permute.xlu0 14
    %224 = vperm.xlu0 %223, %v39
    %v225 = vpop.permute.xlu0 %224
    %v227 = vperm.slane %v222, 0
    %v228 = vadd.f32 %v225, %v227
    %v229 = vmax.f32 %v228, 0.0
    %s230 = sadd.s32 %s37, 14
    %s231 = sld [smem:[#allocation4 + %s230]]
    %v232 = vstv %s231
    %v233 = vmul.f32 %v229, %v232
    %v234 = vadd.f32 %v221, %v233
    %v235 = vld [vmem:[%s1 + $0xf] sm:$0x1]
    %236 = vset.pattern.permute.xlu0 15
    %237 = vperm.xlu0 %236, %v39
    %v238 = vpop.permute.xlu0 %237
    %v240 = vperm.slane %v235, 0
    %v241 = vadd.f32 %v238, %v240
    %v242 = vmax.f32 %v241, 0.0
    %s243 = sadd.s32 %s37, 15
    %s244 = sld [smem:[#allocation4 + %s243]]
    %v245 = vstv %s244
    %v246 = vmul.f32 %v242, %v245
    %v247 = vadd.f32 %v234, %v246
    %v248 = vld [vmem:[%s1 + $0x10] sm:$0x1]
    %249 = vset.pattern.permute.xlu0 16
    %250 = vperm.xlu0 %249, %v39
    %v251 = vpop.permute.xlu0 %250
    %v253 = vperm.slane %v248, 0
    %v254 = vadd.f32 %v251, %v253
    %v255 = vmax.f32 %v254, 0.0
    %s256 = sadd.s32 %s37, 16
    %s257 = sld [smem:[#allocation4 + %s256]]
    %v258 = vstv %s257
    %v259 = vmul.f32 %v255, %v258
    %v260 = vadd.f32 %v247, %v259
    %v261 = vld [vmem:[%s1 + $0x11] sm:$0x1]
    %262 = vset.pattern.permute.xlu0 17
    %263 = vperm.xlu0 %262, %v39
    %v264 = vpop.permute.xlu0 %263
    %v266 = vperm.slane %v261, 0
    %v267 = vadd.f32 %v264, %v266
    %v268 = vmax.f32 %v267, 0.0
    %s269 = sadd.s32 %s37, 17
    %s270 = sld [smem:[#allocation4 + %s269]]
    %v271 = vstv %s270
    %v272 = vmul.f32 %v268, %v271
    %v273 = vadd.f32 %v260, %v272
    %v274 = vld [vmem:[%s1 + $0x12] sm:$0x1]
    %275 = vset.pattern.permute.xlu0 18
    %276 = vperm.xlu0 %275, %v39
    %v277 = vpop.permute.xlu0 %276
    %v279 = vperm.slane %v274, 0
    %v280 = vadd.f32 %v277, %v279
    %v281 = vmax.f32 %v280, 0.0
    %s282 = sadd.s32 %s37, 18
    %s283 = sld [smem:[#allocation4 + %s282]]
    %v284 = vstv %s283
    %v285 = vmul.f32 %v281, %v284
    %v286 = vadd.f32 %v273, %v285
    %v287 = vld [vmem:[%s1 + $0x13] sm:$0x1]
    %288 = vset.pattern.permute.xlu0 19
    %289 = vperm.xlu0 %288, %v39
    %v290 = vpop.permute.xlu0 %289
    %v292 = vperm.slane %v287, 0
    %v293 = vadd.f32 %v290, %v292
    %v294 = vmax.f32 %v293, 0.0
    %s295 = sadd.s32 %s37, 19
    %s296 = sld [smem:[#allocation4 + %s295]]
    %v297 = vstv %s296
    %v298 = vmul.f32 %v294, %v297
    %v299 = vadd.f32 %v286, %v298
    %v300 = vld [vmem:[%s1 + $0x14] sm:$0x1]
    %301 = vset.pattern.permute.xlu0 20
    %302 = vperm.xlu0 %301, %v39
    %v303 = vpop.permute.xlu0 %302
    %v305 = vperm.slane %v300, 0
    %v306 = vadd.f32 %v303, %v305
    %v307 = vmax.f32 %v306, 0.0
    %s308 = sadd.s32 %s37, 20
    %s309 = sld [smem:[#allocation4 + %s308]]
    %v310 = vstv %s309
    %v311 = vmul.f32 %v307, %v310
    %v312 = vadd.f32 %v299, %v311
    %v313 = vld [vmem:[%s1 + $0x15] sm:$0x1]
    %314 = vset.pattern.permute.xlu0 21
    %315 = vperm.xlu0 %314, %v39
    %v316 = vpop.permute.xlu0 %315
    %v318 = vperm.slane %v313, 0
    %v319 = vadd.f32 %v316, %v318
    %v320 = vmax.f32 %v319, 0.0
    %s321 = sadd.s32 %s37, 21
    %s322 = sld [smem:[#allocation4 + %s321]]
    %v323 = vstv %s322
    %v324 = vmul.f32 %v320, %v323
    %v325 = vadd.f32 %v312, %v324
    %v326 = vld [vmem:[%s1 + $0x16] sm:$0x1]
    %327 = vset.pattern.permute.xlu0 22
    %328 = vperm.xlu0 %327, %v39
    %v329 = vpop.permute.xlu0 %328
    %v331 = vperm.slane %v326, 0
    %v332 = vadd.f32 %v329, %v331
    %v333 = vmax.f32 %v332, 0.0
    %s334 = sadd.s32 %s37, 22
    %s335 = sld [smem:[#allocation4 + %s334]]
    %v336 = vstv %s335
    %v337 = vmul.f32 %v333, %v336
    %v338 = vadd.f32 %v325, %v337
    %v339 = vld [vmem:[%s1 + $0x17] sm:$0x1]
    %340 = vset.pattern.permute.xlu0 23
    %341 = vperm.xlu0 %340, %v39
    %v342 = vpop.permute.xlu0 %341
    %v344 = vperm.slane %v339, 0
    %v345 = vadd.f32 %v342, %v344
    %v346 = vmax.f32 %v345, 0.0
    %s347 = sadd.s32 %s37, 23
    %s348 = sld [smem:[#allocation4 + %s347]]
    %v349 = vstv %s348
    %v350 = vmul.f32 %v346, %v349
    %v351 = vadd.f32 %v338, %v350
    %v352 = vld [vmem:[%s1 + $0x18] sm:$0x1]
    %353 = vset.pattern.permute.xlu0 24
    %354 = vperm.xlu0 %353, %v39
    %v355 = vpop.permute.xlu0 %354
    %v357 = vperm.slane %v352, 0
    %v358 = vadd.f32 %v355, %v357
    %v359 = vmax.f32 %v358, 0.0
    %s360 = sadd.s32 %s37, 24
    %s361 = sld [smem:[#allocation4 + %s360]]
    %v362 = vstv %s361
    %v363 = vmul.f32 %v359, %v362
    %v364 = vadd.f32 %v351, %v363
    %v365 = vld [vmem:[%s1 + $0x19] sm:$0x1]
    %366 = vset.pattern.permute.xlu0 25
    %367 = vperm.xlu0 %366, %v39
    %v368 = vpop.permute.xlu0 %367
    %v370 = vperm.slane %v365, 0
    %v371 = vadd.f32 %v368, %v370
    %v372 = vmax.f32 %v371, 0.0
    %s373 = sadd.s32 %s37, 25
    %s374 = sld [smem:[#allocation4 + %s373]]
    %v375 = vstv %s374
    %v376 = vmul.f32 %v372, %v375
    %v377 = vadd.f32 %v364, %v376
    %v378 = vld [vmem:[%s1 + $0x1a] sm:$0x1]
    %379 = vset.pattern.permute.xlu0 26
    %380 = vperm.xlu0 %379, %v39
    %v381 = vpop.permute.xlu0 %380
    %v383 = vperm.slane %v378, 0
    %v384 = vadd.f32 %v381, %v383
    %v385 = vmax.f32 %v384, 0.0
    %s386 = sadd.s32 %s37, 26
    %s387 = sld [smem:[#allocation4 + %s386]]
    %v388 = vstv %s387
    %v389 = vmul.f32 %v385, %v388
    %v390 = vadd.f32 %v377, %v389
    %v391 = vld [vmem:[%s1 + $0x1b] sm:$0x1]
    %392 = vset.pattern.permute.xlu0 27
    %393 = vperm.xlu0 %392, %v39
    %v394 = vpop.permute.xlu0 %393
    %v396 = vperm.slane %v391, 0
    %v397 = vadd.f32 %v394, %v396
    %v398 = vmax.f32 %v397, 0.0
    %s399 = sadd.s32 %s37, 27
    %s400 = sld [smem:[#allocation4 + %s399]]
    %v401 = vstv %s400
    %v402 = vmul.f32 %v398, %v401
    %v403 = vadd.f32 %v390, %v402
    %v404 = vld [vmem:[%s1 + $0x1c] sm:$0x1]
    %405 = vset.pattern.permute.xlu0 28
    %406 = vperm.xlu0 %405, %v39
    %v407 = vpop.permute.xlu0 %406
    %v409 = vperm.slane %v404, 0
    %v410 = vadd.f32 %v407, %v409
    %v411 = vmax.f32 %v410, 0.0
    %s412 = sadd.s32 %s37, 28
    %s413 = sld [smem:[#allocation4 + %s412]]
    %v414 = vstv %s413
    %v415 = vmul.f32 %v411, %v414
    %v416 = vadd.f32 %v403, %v415
    %v417 = vld [vmem:[%s1 + $0x1d] sm:$0x1]
    %418 = vset.pattern.permute.xlu0 29
    %419 = vperm.xlu0 %418, %v39
    %v420 = vpop.permute.xlu0 %419
    %v422 = vperm.slane %v417, 0
    %v423 = vadd.f32 %v420, %v422
    %v424 = vmax.f32 %v423, 0.0
    %s425 = sadd.s32 %s37, 29
    %s426 = sld [smem:[#allocation4 + %s425]]
    %v427 = vstv %s426
    %v428 = vmul.f32 %v424, %v427
    %v429 = vadd.f32 %v416, %v428
    %v430 = vld [vmem:[%s1 + $0x1e] sm:$0x1]
    %431 = vset.pattern.permute.xlu0 30
    %432 = vperm.xlu0 %431, %v39
    %v433 = vpop.permute.xlu0 %432
    %v435 = vperm.slane %v430, 0
    %v436 = vadd.f32 %v433, %v435
    %v437 = vmax.f32 %v436, 0.0
    %s438 = sadd.s32 %s37, 30
    %s439 = sld [smem:[#allocation4 + %s438]]
    %v440 = vstv %s439
    %v441 = vmul.f32 %v437, %v440
    %v442 = vadd.f32 %v429, %v441
    %v443 = vld [vmem:[%s1 + $0x1f] sm:$0x1]
    %444 = vset.pattern.permute.xlu0 31
    %445 = vperm.xlu0 %444, %v39
    %v446 = vpop.permute.xlu0 %445
    %v448 = vperm.slane %v443, 0
    %v449 = vadd.f32 %v446, %v448
    %v450 = vmax.f32 %v449, 0.0
    %s451 = sadd.s32 %s37, 31
    %s452 = sld [smem:[#allocation4 + %s451]]
    %v453 = vstv %s452
    %v454 = vmul.f32 %v450, %v453
    %v455 = vadd.f32 %v442, %v454
    %456 = vst [vmem:[#allocation2] sm:$0xff] %v455
    // Predicated region
    $region26: #{relation_module_forward.1} parent=1 // pred_check
      %p457 = pneg %p32
    $region27: #{relation_module_forward.1} parent=1 // pred_check_branch
      %459 = sbr.rel (%p457) target = $region29
    $region28: #{relation_module_forward.1} parent=1 // pred_region
      %s460 = sld [smem:[#allocation3]]
      %v461 = vstv %s460
      %v462 = vadd.f32 %v455, %v461
      %v463 = vxor.u32 %v462, 2147483648
      %v464 = vmul.f32 %v463, 1.442695
      %v465 = vpow.pop %v464
      %v466 = vadd.f32 %v465, 1.0
      %v467 = vrcp.pop %v466
      %v468 = vmul.f32 %v466, %v467
      %v469 = vsub.f32 1.0, %v468
      %v470 = vmul.f32 %v467, %v469
      %v471 = vadd.f32 %v467, %v470
      %vm472 = vweird.f32 %v466
      %vm473 = vweird.f32 %v467
      %vm474 = vmor %vm472, %vm473
      %v475 = vsel %vm474, %v467, %v471
      %v476 = vand.u32 2147483647, %v466
      %vm477 = vcmp.eq.f32.partialorder %v476, 8.507059e+37
      %v478 = vand.u32 %v466, 2147483648
      %v479 = vor.u32 1.1754944e-38, %v478
      %v480 = vsel %vm477, %v479, %v475
      %v481 = vmul.f32 1.0, %v480
      %482 = vst [vmem:[#allocation7] sm:$0xff] %v481
    $region29: #{relation_module_forward.1} parent=1 // pred_fallthru
      _
    // Predicated region
    $region30: #{relation_module_forward.1} parent=1 // pred_check
      _
    $region31: #{relation_module_forward.1} parent=1 // pred_check_branch
      %484 = sbr.rel (0) target = $region33
    $region32: #{relation_module_forward.1} parent=1 // pred_region
      %486 = vsyncadd [#allocation5], 0
      %s488 = sshll.u32 [#allocation7], 4
      %s489 = int_to_ptr.vmem [resolvable:$true] %s488
      %s490 = sshll.u32 %s4, 4
      %s491 = int_to_ptr.hbm [resolvable:$true] %s490
      %493 = dma.vmem_to_hbm [thread:$0]  %s489, 128, %s491, [#allocation5]
    $region33: #{relation_module_forward.1} parent=1 // pred_fallthru
      _
    // Predicated region
    $region34: #{relation_module_forward.1} parent=1 // pred_check
      _
    $region35: #{relation_module_forward.1} parent=1 // pred_check_branch
      %495 = sbr.rel (0) target = $region37
    $region36: #{relation_module_forward.1} parent=1 // pred_region
      %497 = dma.done [#allocation5], 128
    $region37: #{relation_module_forward.1} parent=1 // pred_fallthru
      _
    %498 = vsyncpa [#allocation5], 1
    %499 = vsyncpa [#allocation6], 1

</llo_original>
